<compile_context>
chip_gen: v6e
topology: v6e:2x2x1
jax: 0.10.0
libtpu: 0.0.40
codegen_flags: <defaults>
</compile_context>

<pallas_src>
import jax
import jax.numpy as jnp
from jax.experimental import pallas as pl
from jax.experimental.pallas import tpu as pltpu


# ----------------------------- FFT glue (plain JAX) -----------------------------

def rfftshift(x):
    """Left half of fftshift(fft2(x)) built from rfft2(x) (matches torch ref)."""
    return jnp.conj(jnp.flip(jnp.fft.fftshift(x, axes=-2), axis=-1))


def irfftshift(x):
    """Inverse of rfftshift (matches torch ref)."""
    return jnp.conj(jnp.flip(jnp.fft.ifftshift(x, axes=-2), axis=-1))


def symmetric_padding(xf_old, im_shape_old, im_shape_new):
    """Port of the torch symmetric_padding (all pads non-negative in this config)."""
    im_shape_old = tuple(int(s) for s in im_shape_old)
    im_shape_new = tuple(int(s) for s in im_shape_new)
    add_shape = xf_old.shape[:-2]
    ft_height_old = im_shape_old[-2] + (1 - im_shape_old[-2] % 2)
    ft_width_old = im_shape_old[-1] // 2 + 1
    ft_height_new = im_shape_new[-2] + (1 - im_shape_new[-2] % 2)
    ft_width_new = im_shape_new[-1] // 2 + 1
    pad_height = (ft_height_new - ft_height_old) // 2
    pad_width = ft_width_new - ft_width_old
    # TODO(synk): negative pads (down-interpolation) would need cropping; not hit here.
    assert pad_height >= 0 and pad_width >= 0

    xf = jnp.zeros(add_shape + (ft_height_old, ft_width_old), dtype=jnp.complex64)
    xf = xf.at[..., : im_shape_old[-2], :].set(xf_old.astype(jnp.complex64))
    if im_shape_old[-2] % 2 == 0:
        xf = xf.at[..., 0, :].multiply(0.5)
        xf = xf.at[..., -1, :].set(xf[..., 0, :])
    if im_shape_old[-1] % 2 == 0:
        xf = xf.at[..., :, 0].multiply(0.5)

    pad_cfg = [(0, 0)] * (xf.ndim - 2) + [(pad_height, pad_height), (pad_width, 0)]
    xf_pad = jnp.pad(xf, pad_cfg)
    if im_shape_new[-2] % 2 == 0:
        xf_pad = xf_pad.at[..., 0, :].multiply(2)
    if im_shape_new[-1] % 2 == 0:
        xf_pad = xf_pad.at[..., :, 0].multiply(2)
    return xf_pad[..., : im_shape_new[-2], :]


# ----------------------------- Pallas kernel: compl_mul2d -----------------------------

def _make_compl_mul_kernel(cin):
    # TODO(synk): for Cin >= ~16 replace the static unroll with
    # lax.fori_loop(..., unroll=4-8) accumulating into VMEM scratch to bound live vregs.
    def kernel(x_ref, w_ref, o_ref):
        # x_ref: (2, 1, Cin, Pt)   w_ref: (2, Cin, Cout, Pt)   o_ref: (2, 1, Cout, Pt)
        def step(i):
            # In-kernel replication: the (1, Pt) x row broadcasts over the Cout
            # sublanes of the (Cout, Pt) weight tile — no host-side expansion.
            xr = x_ref[0, 0, i:i + 1, :]
            xi = x_ref[1, 0, i:i + 1, :]
            wr = w_ref[0, i, :, :]
            wi = w_ref[1, i, :, :]
            return xr * wr - xi * wi, xr * wi + xi * wr

        # Peeled i=0: init accumulators from the first product (loop is VALU-bound,
        # so the saved zero-fill + adds are free wins).
        acc_r, acc_i = step(0)
        for i in range(1, cin):
            pr, pi = step(i)
            acc_r = acc_r + pr
            acc_i = acc_i + pi

        # Lane-dense stores: minor dim Pt is a multiple of 128.
        o_ref[0, 0, :, :] = acc_r
        o_ref[1, 0, :, :] = acc_i

    return kernel


def compl_mul2d_pallas(x_ft, w_ft, *, max_pt=1024, vmem_budget=24 << 20):
    """out[b,o,x,y] = sum_i x_ft[b,i,x,y] * w_ft[i,o,x,y]  (complex, per-mode weights)."""
    B, Cin, Hf, Wf = x_ft.shape
    Cout = w_ft.shape[1]
    P = Hf * Wf

    # Lane-tile size Pt: multiple of 128, sized so the double-buffered x/w/out f32
    # real+imag tiles fit well under the default scoped-VMEM limit on every generation.
    bytes_per_128_lanes = 16 * 128 * (Cin + Cin * Cout + Cout)   # r/i f32, double-buffered
    cap = max(1, vmem_budget // bytes_per_128_lanes) * 128
    pt = max(128, min(cap, max_pt, ((P + 127) // 128) * 128))
    P_pad = ((P + pt - 1) // pt) * pt
    n_pt = P_pad // pt

    def flatten_pad(z):  # (..., Hf, Wf) complex -> f32 (2, ..., P_pad) [real, imag]
        zr = jnp.real(z).reshape(z.shape[:-2] + (P,)).astype(jnp.float32)
        zi = jnp.imag(z).reshape(z.shape[:-2] + (P,)).astype(jnp.float32)
        zri = jnp.stack([zr, zi])
        pad = [(0, 0)] * (zri.ndim - 1) + [(0, P_pad - P)]
        return jnp.pad(zri, pad)

    x_ri = flatten_pad(x_ft)   # (2, B,   Cin,  P_pad)
    w_ri = flatten_pad(w_ft)   # (2, Cin, Cout, P_pad)

    # Grid: spectral tiles outer ("parallel" -> v7x's 2 TCs split them), batch inner
    # ("arbitrary").  The weight index_map ignores b, so each weight tile is DMA'd once
    # per P tile and reused across the whole batch.
    out = pl.pallas_call(
        _make_compl_mul_kernel(Cin),
        out_shape=jax.ShapeDtypeStruct((2, B, Cout, P_pad), jnp.float32),
        grid=(n_pt, B),
        in_specs=[
            pl.BlockSpec((2, 1, Cin, pt), lambda p, b: (0, b, 0, p)),
            pl.BlockSpec((2, Cin, Cout, pt), lambda p, b: (0, 0, 0, p)),
        ],
        out_specs=pl.BlockSpec((2, 1, Cout, pt), lambda p, b: (0, b, 0, p)),
        compiler_params=pltpu.CompilerParams(
            dimension_semantics=("parallel", "arbitrary")),
    )(x_ri, w_ri)

    out_c = out[0, :, :, :P] + 1j * out[1, :, :, :P]     # (B, Cout, P)
    return out_c.reshape(B, Cout, Hf, Wf).astype(jnp.complex64)


# ----------------------------- SpectralConv2d forward -----------------------------

def spectral_conv2d_forward(x, weight, odd, norm="forward", use_pallas=True):
    """Replicates SpectralConv2d.forward for parametrization='spectral',
    in_shape=out_shape=None, stride=(1,1), conv_like_cnn=False."""
    B, Cin, H, W = x.shape
    x_shape = (H, W)
    im_shape_new = (H, W)
    ksize1 = weight.shape[-2]
    ksize2 = 2 * (weight.shape[-1] - 1) + odd
    kernel_shape = (ksize1, ksize2)
    target = (im_shape_new[0] + (1 - im_shape_new[0] % 2),
              im_shape_new[1] + (1 - im_shape_new[1] % 2))

    multiplier_padded = symmetric_padding(weight, kernel_shape, target)
    x_ft = rfftshift(jnp.fft.rfft2(x, norm=norm))
    x_ft_padded = symmetric_padding(x_ft, x_shape, target)

    if use_pallas:
        out_ft = compl_mul2d_pallas(x_ft_padded, multiplier_padded)
    else:
        out_ft = jnp.einsum("bixy,ioxy->boxy", x_ft_padded, multiplier_padded)

    out_ft = symmetric_padding(out_ft, target, im_shape_new)
    output = jnp.fft.irfft2(irfftshift(out_ft), s=im_shape_new, norm=norm)
    # stride=(1,1) -> output[..., 0::1, 0::1] is identity
    return output


# ----------------------------- main -----------------------------

if __name__ == "__main__":
    B, Cin, Cout, H, W = 2, 4, 4, 16, 16
    ksize1, ksize2 = 5, 5

    key = jax.random.PRNGKey(0)
    k_wr, k_wi, k_x = jax.random.split(key, 3)

    # Deterministic parameter init matching the module's __init__ (spectral param.):
    # weight ~ scale * uniform complex, shape (Cin, Cout, ksize1, ksize2//2+1),
    # imag part of the DC entry zeroed.
    scale = 1.0 / (Cin * Cout)
    w_shape = (Cin, Cout, ksize1, ksize2 // 2 + 1)
    wr = jax.random.uniform(k_wr, w_shape, jnp.float32)
    wi = jax.random.uniform(k_wi, w_shape, jnp.float32)
    wi = wi.at[:, :, 0, 0].set(0.0)
    weight = (scale * (wr + 1j * wi)).astype(jnp.complex64)
    odd = ksize2 % 2

    x = jax.random.normal(k_x, (B, Cin, H, W), jnp.float32)

    out = spectral_conv2d_forward(x, weight, odd, use_pallas=True)
    out = jax.block_until_ready(out)

    ref = spectral_conv2d_forward(x, weight, odd, use_pallas=False)
    ref = jax.block_until_ready(ref)

    assert out.shape == (B, Cout, H, W), out.shape
    assert jnp.allclose(out, ref, atol=1e-4, rtol=1e-4), float(jnp.abs(out - ref).max())
    print("KERNEL_OK")
</pallas_src>

<mosaic_0001>
module attributes {stable_mosaic.version = 11 : i64} {
  func.func @kernel(%arg0: i32, %arg1: i32, %arg2: memref<2x1x4x256xf32, #tpu.memory_space<vmem>>, %arg3: memref<2x4x4x256xf32, #tpu.memory_space<vmem>>, %arg4: memref<2x1x4x256xf32, #tpu.memory_space<vmem>>) attributes {dimension_semantics = [#tpu.dimension_semantics<parallel>, #tpu.dimension_semantics<arbitrary>], iteration_bounds = array<i64: 1, 2>, scalar_prefetch = 0 : i64, scratch_operands = 0 : i64, tpu.core_type = #tpu.core_type<tc>, window_params = [{transform_indices = @transform_0, window_bounds = array<i64: 2, 1, 4, 256>}, {transform_indices = @transform_1, window_bounds = array<i64: 2, 4, 4, 256>}, {transform_indices = @transform_2, window_bounds = array<i64: 2, 1, 4, 256>}]} {
    %c0 = arith.constant 0 : index
    %c0_0 = arith.constant 0 : index
    %c0_1 = arith.constant 0 : index
    %c0_2 = arith.constant 0 : index
    %0 = vector.load %arg2[%c0, %c0_0, %c0_1, %c0_2] : memref<2x1x4x256xf32, #tpu.memory_space<vmem>>, vector<1x1x1x256xf32>
    %1 = vector.shape_cast %0 : vector<1x1x1x256xf32> to vector<1x256xf32>
    %c1 = arith.constant 1 : index
    %c0_3 = arith.constant 0 : index
    %c0_4 = arith.constant 0 : index
    %c0_5 = arith.constant 0 : index
    %2 = vector.load %arg2[%c1, %c0_3, %c0_4, %c0_5] : memref<2x1x4x256xf32, #tpu.memory_space<vmem>>, vector<1x1x1x256xf32>
    %3 = vector.shape_cast %2 : vector<1x1x1x256xf32> to vector<1x256xf32>
    %c0_6 = arith.constant 0 : index
    %c0_7 = arith.constant 0 : index
    %c0_8 = arith.constant 0 : index
    %c0_9 = arith.constant 0 : index
    %4 = vector.load %arg3[%c0_6, %c0_7, %c0_8, %c0_9] : memref<2x4x4x256xf32, #tpu.memory_space<vmem>>, vector<1x1x4x256xf32>
    %5 = vector.shape_cast %4 : vector<1x1x4x256xf32> to vector<4x256xf32>
    %c1_10 = arith.constant 1 : index
    %c0_11 = arith.constant 0 : index
    %c0_12 = arith.constant 0 : index
    %c0_13 = arith.constant 0 : index
    %6 = vector.load %arg3[%c1_10, %c0_11, %c0_12, %c0_13] : memref<2x4x4x256xf32, #tpu.memory_space<vmem>>, vector<1x1x4x256xf32>
    %7 = vector.shape_cast %6 : vector<1x1x4x256xf32> to vector<4x256xf32>
    %8 = vector.broadcast %1 : vector<1x256xf32> to vector<4x256xf32>
    %9 = arith.mulf %8, %5 : vector<4x256xf32>
    %10 = vector.broadcast %3 : vector<1x256xf32> to vector<4x256xf32>
    %11 = arith.mulf %10, %7 : vector<4x256xf32>
    %12 = arith.subf %9, %11 : vector<4x256xf32>
    %13 = vector.broadcast %1 : vector<1x256xf32> to vector<4x256xf32>
    %14 = arith.mulf %13, %7 : vector<4x256xf32>
    %15 = vector.broadcast %3 : vector<1x256xf32> to vector<4x256xf32>
    %16 = arith.mulf %15, %5 : vector<4x256xf32>
    %17 = arith.addf %14, %16 : vector<4x256xf32>
    %c0_14 = arith.constant 0 : index
    %c0_15 = arith.constant 0 : index
    %c1_16 = arith.constant 1 : index
    %c0_17 = arith.constant 0 : index
    %18 = vector.load %arg2[%c0_14, %c0_15, %c1_16, %c0_17] : memref<2x1x4x256xf32, #tpu.memory_space<vmem>>, vector<1x1x1x256xf32>
    %19 = vector.shape_cast %18 : vector<1x1x1x256xf32> to vector<1x256xf32>
    %c1_18 = arith.constant 1 : index
    %c0_19 = arith.constant 0 : index
    %c1_20 = arith.constant 1 : index
    %c0_21 = arith.constant 0 : index
    %20 = vector.load %arg2[%c1_18, %c0_19, %c1_20, %c0_21] : memref<2x1x4x256xf32, #tpu.memory_space<vmem>>, vector<1x1x1x256xf32>
    %21 = vector.shape_cast %20 : vector<1x1x1x256xf32> to vector<1x256xf32>
    %c0_22 = arith.constant 0 : index
    %c1_23 = arith.constant 1 : index
    %c0_24 = arith.constant 0 : index
    %c0_25 = arith.constant 0 : index
    %22 = vector.load %arg3[%c0_22, %c1_23, %c0_24, %c0_25] : memref<2x4x4x256xf32, #tpu.memory_space<vmem>>, vector<1x1x4x256xf32>
    %23 = vector.shape_cast %22 : vector<1x1x4x256xf32> to vector<4x256xf32>
    %c1_26 = arith.constant 1 : index
    %c1_27 = arith.constant 1 : index
    %c0_28 = arith.constant 0 : index
    %c0_29 = arith.constant 0 : index
    %24 = vector.load %arg3[%c1_26, %c1_27, %c0_28, %c0_29] : memref<2x4x4x256xf32, #tpu.memory_space<vmem>>, vector<1x1x4x256xf32>
    %25 = vector.shape_cast %24 : vector<1x1x4x256xf32> to vector<4x256xf32>
    %26 = vector.broadcast %19 : vector<1x256xf32> to vector<4x256xf32>
    %27 = arith.mulf %26, %23 : vector<4x256xf32>
    %28 = vector.broadcast %21 : vector<1x256xf32> to vector<4x256xf32>
    %29 = arith.mulf %28, %25 : vector<4x256xf32>
    %30 = arith.subf %27, %29 : vector<4x256xf32>
    %31 = vector.broadcast %19 : vector<1x256xf32> to vector<4x256xf32>
    %32 = arith.mulf %31, %25 : vector<4x256xf32>
    %33 = vector.broadcast %21 : vector<1x256xf32> to vector<4x256xf32>
    %34 = arith.mulf %33, %23 : vector<4x256xf32>
    %35 = arith.addf %32, %34 : vector<4x256xf32>
    %36 = arith.addf %12, %30 : vector<4x256xf32>
    %37 = arith.addf %17, %35 : vector<4x256xf32>
    %c0_30 = arith.constant 0 : index
    %c0_31 = arith.constant 0 : index
    %c2 = arith.constant 2 : index
    %c0_32 = arith.constant 0 : index
    %38 = vector.load %arg2[%c0_30, %c0_31, %c2, %c0_32] : memref<2x1x4x256xf32, #tpu.memory_space<vmem>>, vector<1x1x1x256xf32>
    %39 = vector.shape_cast %38 : vector<1x1x1x256xf32> to vector<1x256xf32>
    %c1_33 = arith.constant 1 : index
    %c0_34 = arith.constant 0 : index
    %c2_35 = arith.constant 2 : index
    %c0_36 = arith.constant 0 : index
    %40 = vector.load %arg2[%c1_33, %c0_34, %c2_35, %c0_36] : memref<2x1x4x256xf32, #tpu.memory_space<vmem>>, vector<1x1x1x256xf32>
    %41 = vector.shape_cast %40 : vector<1x1x1x256xf32> to vector<1x256xf32>
    %c0_37 = arith.constant 0 : index
    %c2_38 = arith.constant 2 : index
    %c0_39 = arith.constant 0 : index
    %c0_40 = arith.constant 0 : index
    %42 = vector.load %arg3[%c0_37, %c2_38, %c0_39, %c0_40] : memref<2x4x4x256xf32, #tpu.memory_space<vmem>>, vector<1x1x4x256xf32>
    %43 = vector.shape_cast %42 : vector<1x1x4x256xf32> to vector<4x256xf32>
    %c1_41 = arith.constant 1 : index
    %c2_42 = arith.constant 2 : index
    %c0_43 = arith.constant 0 : index
    %c0_44 = arith.constant 0 : index
    %44 = vector.load %arg3[%c1_41, %c2_42, %c0_43, %c0_44] : memref<2x4x4x256xf32, #tpu.memory_space<vmem>>, vector<1x1x4x256xf32>
    %45 = vector.shape_cast %44 : vector<1x1x4x256xf32> to vector<4x256xf32>
    %46 = vector.broadcast %39 : vector<1x256xf32> to vector<4x256xf32>
    %47 = arith.mulf %46, %43 : vector<4x256xf32>
    %48 = vector.broadcast %41 : vector<1x256xf32> to vector<4x256xf32>
    %49 = arith.mulf %48, %45 : vector<4x256xf32>
    %50 = arith.subf %47, %49 : vector<4x256xf32>
    %51 = vector.broadcast %39 : vector<1x256xf32> to vector<4x256xf32>
    %52 = arith.mulf %51, %45 : vector<4x256xf32>
    %53 = vector.broadcast %41 : vector<1x256xf32> to vector<4x256xf32>
    %54 = arith.mulf %53, %43 : vector<4x256xf32>
    %55 = arith.addf %52, %54 : vector<4x256xf32>
    %56 = arith.addf %36, %50 : vector<4x256xf32>
    %57 = arith.addf %37, %55 : vector<4x256xf32>
    %c0_45 = arith.constant 0 : index
    %c0_46 = arith.constant 0 : index
    %c3 = arith.constant 3 : index
    %c0_47 = arith.constant 0 : index
    %58 = vector.load %arg2[%c0_45, %c0_46, %c3, %c0_47] : memref<2x1x4x256xf32, #tpu.memory_space<vmem>>, vector<1x1x1x256xf32>
    %59 = vector.shape_cast %58 : vector<1x1x1x256xf32> to vector<1x256xf32>
    %c1_48 = arith.constant 1 : index
    %c0_49 = arith.constant 0 : index
    %c3_50 = arith.constant 3 : index
    %c0_51 = arith.constant 0 : index
    %60 = vector.load %arg2[%c1_48, %c0_49, %c3_50, %c0_51] : memref<2x1x4x256xf32, #tpu.memory_space<vmem>>, vector<1x1x1x256xf32>
    %61 = vector.shape_cast %60 : vector<1x1x1x256xf32> to vector<1x256xf32>
    %c0_52 = arith.constant 0 : index
    %c3_53 = arith.constant 3 : index
    %c0_54 = arith.constant 0 : index
    %c0_55 = arith.constant 0 : index
    %62 = vector.load %arg3[%c0_52, %c3_53, %c0_54, %c0_55] : memref<2x4x4x256xf32, #tpu.memory_space<vmem>>, vector<1x1x4x256xf32>
    %63 = vector.shape_cast %62 : vector<1x1x4x256xf32> to vector<4x256xf32>
    %c1_56 = arith.constant 1 : index
    %c3_57 = arith.constant 3 : index
    %c0_58 = arith.constant 0 : index
    %c0_59 = arith.constant 0 : index
    %64 = vector.load %arg3[%c1_56, %c3_57, %c0_58, %c0_59] : memref<2x4x4x256xf32, #tpu.memory_space<vmem>>, vector<1x1x4x256xf32>
    %65 = vector.shape_cast %64 : vector<1x1x4x256xf32> to vector<4x256xf32>
    %66 = vector.broadcast %59 : vector<1x256xf32> to vector<4x256xf32>
    %67 = arith.mulf %66, %63 : vector<4x256xf32>
    %68 = vector.broadcast %61 : vector<1x256xf32> to vector<4x256xf32>
    %69 = arith.mulf %68, %65 : vector<4x256xf32>
    %70 = arith.subf %67, %69 : vector<4x256xf32>
    %71 = vector.broadcast %59 : vector<1x256xf32> to vector<4x256xf32>
    %72 = arith.mulf %71, %65 : vector<4x256xf32>
    %73 = vector.broadcast %61 : vector<1x256xf32> to vector<4x256xf32>
    %74 = arith.mulf %73, %63 : vector<4x256xf32>
    %75 = arith.addf %72, %74 : vector<4x256xf32>
    %76 = arith.addf %56, %70 : vector<4x256xf32>
    %77 = arith.addf %57, %75 : vector<4x256xf32>
    %c0_60 = arith.constant 0 : index
    %c0_61 = arith.constant 0 : index
    %c0_62 = arith.constant 0 : index
    %c0_63 = arith.constant 0 : index
    %78 = vector.load %arg4[%c0_60, %c0_61, %c0_62, %c0_63] : memref<2x1x4x256xf32, #tpu.memory_space<vmem>>, vector<1x1x4x256xf32>
    %79 = vector.shape_cast %78 : vector<1x1x4x256xf32> to vector<4x256xf32>
    %80 = vector.shape_cast %76 : vector<4x256xf32> to vector<1x1x4x256xf32>
    tpu.vector_store %arg4[%c0_60, %c0_61, %c0_62, %c0_63], %80 {strides = array<i32>} : memref<2x1x4x256xf32, #tpu.memory_space<vmem>>, vector<1x1x4x256xf32>,
    %c1_64 = arith.constant 1 : index
    %c0_65 = arith.constant 0 : index
    %c0_66 = arith.constant 0 : index
    %c0_67 = arith.constant 0 : index
    %81 = vector.load %arg4[%c1_64, %c0_65, %c0_66, %c0_67] : memref<2x1x4x256xf32, #tpu.memory_space<vmem>>, vector<1x1x4x256xf32>
    %82 = vector.shape_cast %81 : vector<1x1x4x256xf32> to vector<4x256xf32>
    %83 = vector.shape_cast %77 : vector<4x256xf32> to vector<1x1x4x256xf32>
    tpu.vector_store %arg4[%c1_64, %c0_65, %c0_66, %c0_67], %83 {strides = array<i32>} : memref<2x1x4x256xf32, #tpu.memory_space<vmem>>, vector<1x1x4x256xf32>,
    return
  }
  func.func @transform_0(%arg0: i32, %arg1: i32) -> (i32, i32, i32, i32) {
    %c0_i32 = arith.constant 0 : i32
    %c0_i32_0 = arith.constant 0 : i32
    %c0_i32_1 = arith.constant 0 : i32
    return %c0_i32, %arg1, %c0_i32_0, %arg0 : i32, i32, i32, i32
  }
  func.func @transform_1(%arg0: i32, %arg1: i32) -> (i32, i32, i32, i32) {
    %c0_i32 = arith.constant 0 : i32
    %c0_i32_0 = arith.constant 0 : i32
    %c0_i32_1 = arith.constant 0 : i32
    %c0_i32_2 = arith.constant 0 : i32
    return %c0_i32, %c0_i32_0, %c0_i32_1, %arg0 : i32, i32, i32, i32
  }
  func.func @transform_2(%arg0: i32, %arg1: i32) -> (i32, i32, i32, i32) {
    %c0_i32 = arith.constant 0 : i32
    %c0_i32_0 = arith.constant 0 : i32
    %c0_i32_1 = arith.constant 0 : i32
    return %c0_i32, %arg1, %c0_i32_0, %arg0 : i32, i32, i32, i32
  }
}

</mosaic_0001>

<llo_original>
// kernel: tpu_custom_call.1
$region0: #{tpu_custom_call.1}
  #allocation0 [shape = 'u32[]', space=smem, size = 0x4, offset = 0x4, fixed_abs, tag = 'smem constant byte address 0x4 - core index']
  #allocation1 [shape = 'u32[144,128]{1,0:T(1,128)}', space=vmem, size = 0x12000, scoped, tag = 'internal scratch']
  %s0 = inlined_call_operand.hbm [shape: f32[2,2,4,256], index: 0, kind: input, shape index: {}]
  %s1 = inlined_call_operand.hbm [shape: f32[2,4,4,256], index: 1, kind: input, shape index: {}]
  %s2 = inlined_call_operand.hbm [shape: f32[2,2,4,256], index: 2, kind: output, shape index: {}]
  %s3 = sld [smem:[#allocation0]]
  $region49: #{tpu_custom_call.1} parent=0
    _
  %s5 = ssub.s32 1, %s3
  %s6 = scalar_select 0, %s5, %s3
  $region1: #{tpu_custom_call.1} parent=0
    #allocation2 [shape = 'u8[16384]{0}', space=vmem, size = 0x4000, scoped, tag = 'input window, operand 0']
    #allocation3 [shape = 's32[2]{0}', space=sflag, size = 0x8, scoped, tag = 'scoped memory for tpu_custom_call.1']
    #allocation4 [shape = 's32[2]{0}', space=sflag, size = 0x8, scoped, tag = 'scoped memory for tpu_custom_call.1']
    #allocation5 [shape = 'u8[32768]{0}', space=vmem, size = 0x8000, scoped, tag = 'input window, operand 1, single buffered']
    #allocation6 [shape = 's32[1]{0}', space=sflag, size = 0x4, scoped, tag = 'scoped memory for tpu_custom_call.1']
    #allocation7 [shape = 'u8[16384]{0}', space=vmem, size = 0x4000, scoped, tag = 'output window, operand 0']
    %7 = vsyncpa [#allocation3], 0
    %s8 = scalar_lea.sflag [#allocation3], 1
    %9 = vsyncpa %s8, 0
    %10 = vsyncpa [#allocation6], 0
    %11 = vsyncpa [#allocation4], 0
    %s12 = scalar_lea.sflag [#allocation4], 1
    %13 = vsyncpa %s12, 0
    loop: start=0, step=1, limit=4
    $region2: #{tpu_custom_call.1} parent=1 // loop_pre_header
      _
    $region3: #{tpu_custom_call.1} parent=1 // loop_header
      %s15 = sphi 0, %s19
      %p16 = scmp.ge.s32.totalorder %s15, 4
      %s22 = sphi 0, %s34
      %s23 = sphi 0, %s30
      %s24 = sphi 0, %s22
      %s25 = sphi 0, %s23
      %s26 = sphi 0, %s24
      %s27 = sphi 0, %s25
      %s39 = sphi 0, %s41
      %s42 = sphi 0, %s39
      %s43 = sphi 0, %s42
      %s59 = sphi 0, %s43
      %s65 = sphi 0, %s67
      %s68 = sphi 0, %s65
      %s69 = sphi 0, %s68
      %s85 = sphi 0, %s69
      %s93 = sphi 0, %s95
      %s96 = sphi 0, %s93
      %s97 = sphi 0, %s96
      %s113 = sphi 0, %s97
    $region4: #{tpu_custom_call.1} parent=1 // loop_header_branch
      %18 = sbr.rel (%p16) target = $region8
    $region5: #{tpu_custom_call.1} parent=1 // loop_body
      %s20 = ssub.s32 %s15, 1
      %s21 = ssub.s32 %s15, 2
      %s28 = sadd.s32 1, %s23
      %p29 = scmp.ge.s32.totalorder %s28, 2
      %s30 = scalar_select %p29, 0, %s28
      %s31 = sadd.s32 1, %s22
      %s32 = scalar_select %p29, %s31, %s22
      %p33 = scmp.ge.s32.totalorder %s32, 1
      %s34 = scalar_select %p33, 0, %s32
      %s35 = ssub.s32 %s23, %s30
      %s36 = ssub.s32 %s22, %s34
      %s37 = sor.u32 %s35, %s36
      %p38 = scmp.eq.s32.totalorder %s37, 0
      %s40 = sadd.s32 %s39, 1
      %s41 = scalar_select %p38, %s39, %s40
      %p44 = pneg %p38
      %p45 = scmp.eq.s32.totalorder %s15, 1
      %p46 = por %p44, %p45
      %p47 = scmp.ne.s32.totalorder %s39, %s42
      %p48 = scmp.eq.s32.totalorder %s15, 0
      %p49 = por %p47, %p48
      %p50 = scmp.ne.s32.totalorder %s39, %s42
      %p51 = scmp.eq.s32.totalorder %s20, 1
      %p52 = por %p50, %p51
      %p53 = scmp.ne.s32.totalorder %s42, %s43
      %p54 = scmp.eq.s32.totalorder %s20, 0
      %p55 = por %p53, %p54
      %p56 = scmp.ne.s32.totalorder %s42, %s43
      %p57 = scmp.eq.s32.totalorder %s21, 1
      %p58 = por %p56, %p57
      %p60 = scmp.ne.s32.totalorder %s43, %s59
      %p61 = scmp.eq.s32.totalorder %s21, 0
      %p62 = por %p60, %p61
      %s63 = ssub.s32 %s22, %s34
      %p64 = scmp.eq.s32.totalorder %s63, 0
      %s66 = sadd.s32 %s65, 1
      %s67 = scalar_select %p64, %s65, %s66
      %p70 = pneg %p64
      %p71 = scmp.eq.s32.totalorder %s15, 1
      %p72 = por %p70, %p71
      %p73 = scmp.ne.s32.totalorder %s65, %s68
      %p74 = scmp.eq.s32.totalorder %s15, 0
      %p75 = por %p73, %p74
      %p76 = scmp.ne.s32.totalorder %s65, %s68
      %p77 = scmp.eq.s32.totalorder %s20, 1
      %p78 = por %p76, %p77
      %p79 = scmp.ne.s32.totalorder %s68, %s69
      %p80 = scmp.eq.s32.totalorder %s20, 0
      %p81 = por %p79, %p80
      %p82 = scmp.ne.s32.totalorder %s68, %s69
      %p83 = scmp.eq.s32.totalorder %s21, 1
      %p84 = por %p82, %p83
      %p86 = scmp.ne.s32.totalorder %s69, %s85
      %p87 = scmp.eq.s32.totalorder %s21, 0
      %p88 = por %p86, %p87
      %s89 = ssub.s32 %s23, %s30
      %s90 = ssub.s32 %s22, %s34
      %s91 = sor.u32 %s89, %s90
      %p92 = scmp.eq.s32.totalorder %s91, 0
      %s94 = sadd.s32 %s93, 1
      %s95 = scalar_select %p92, %s93, %s94
      %p98 = pneg %p92
      %p99 = scmp.eq.s32.totalorder %s15, 1
      %p100 = por %p98, %p99
      %p101 = scmp.ne.s32.totalorder %s93, %s96
      %p102 = scmp.eq.s32.totalorder %s15, 0
      %p103 = por %p101, %p102
      %p104 = scmp.ne.s32.totalorder %s93, %s96
      %p105 = scmp.eq.s32.totalorder %s20, 1
      %p106 = por %p104, %p105
      %p107 = scmp.ne.s32.totalorder %s96, %s97
      %p108 = scmp.eq.s32.totalorder %s20, 0
      %p109 = por %p107, %p108
      %p110 = scmp.ne.s32.totalorder %s96, %s97
      %p111 = scmp.eq.s32.totalorder %s21, 1
      %p112 = por %p110, %p111
      %p114 = scmp.ne.s32.totalorder %s97, %s113
      %p115 = scmp.eq.s32.totalorder %s21, 0
      %p116 = por %p114, %p115
      %p117 = scmp.le.s32.totalorder 1, %s15
      %p118 = scmp.lt.s32.totalorder %s15, 3
      %p119 = pnand %p117, %p118
      %p120 = pneg %p119
      // Predicated region
      $region9: #{tpu_custom_call.1} parent=5 // pred_check
        _
      $region10: #{tpu_custom_call.1} parent=5 // pred_check_branch
        %122 = sbr.rel (%p119) target = $region12
      $region11: #{tpu_custom_call.1} parent=5 // pred_region
        %s123 = ssub.s32 %s15, 1
        // Predicated region
        $region13: #{tpu_custom_call.1} parent=11 // pred_check
          %p124 = pneg %p81
        $region14: #{tpu_custom_call.1} parent=11 // pred_check_branch
          %126 = sbr.rel (%p124) target = $region16
        $region15: #{tpu_custom_call.1} parent=11 // pred_region
          %s127 = smul.u32 2, %s24
          %s129 = ssub.s32 1024, 1024
          %130 = vsyncadd [#allocation6], %s129
          %s131 = smul.addr %s127, 64
          %s132 = scalar_lea.hbm %s1, %s131
          %s133 = sshll.u32 [#allocation5], 4
          %s134 = int_to_ptr.vmem [resolvable:$true] %s133
          %139 = dma.hbm_to_vmem [thread:$0]  %s132, 1024, %s134, [#allocation6], 128, 128, 8
        $region16: #{tpu_custom_call.1} parent=11 // pred_fallthru
          _
      $region12: #{tpu_custom_call.1} parent=5 // pred_fallthru
        _
      %p140 = scmp.lt.s32.totalorder %s15, 2
      // Predicated region
      $region17: #{tpu_custom_call.1} parent=5 // pred_check
        %p141 = pneg %p140
      $region18: #{tpu_custom_call.1} parent=5 // pred_check_branch
        %143 = sbr.rel (%p141) target = $region20
      $region19: #{tpu_custom_call.1} parent=5 // pred_region
        // Predicated region
        $region21: #{tpu_custom_call.1} parent=19 // pred_check
          %p144 = pneg %p49
        $region22: #{tpu_custom_call.1} parent=19 // pred_check_branch
          %146 = sbr.rel (%p144) target = $region24
        $region23: #{tpu_custom_call.1} parent=19 // pred_region
          %s147 = sand.u32 %s39, 1
          %s148 = scalar_lea.sflag [#allocation3], %s147
          %s149 = sand.u32 %s39, 1
          %s150 = smul.addr %s149, 16
          %s151 = scalar_lea.vmem [#allocation2], %s150
          %s152 = smul.u32 2, %s22
          %s154 = ssub.s32 256, 256
          %155 = vsyncadd %s148, %s154
          %s156 = smul.addr %s23, 2
          %s157 = sadd.s32 %s152, %s156
          %s158 = smul.addr %s157, 64
          %s159 = scalar_lea.hbm %s0, %s158
          %s160 = sshll.u32 %s151, 4
          %s161 = int_to_ptr.vmem [resolvable:$true] %s160
          %166 = dma.hbm_to_vmem [thread:$0]  %s159, 256, %s161, %s148, 256, 128, 8
        $region24: #{tpu_custom_call.1} parent=19 // pred_fallthru
          _
      $region20: #{tpu_custom_call.1} parent=5 // pred_fallthru
        _
      %p167 = scmp.le.s32.totalorder 1, %s15
      %p168 = scmp.lt.s32.totalorder %s15, 3
      %p169 = pnand %p167, %p168
      %p170 = pneg %p169
      // Predicated region
      $region25: #{tpu_custom_call.1} parent=5 // pred_check
        _
      $region26: #{tpu_custom_call.1} parent=5 // pred_check_branch
        %172 = sbr.rel (%p169) target = $region28
      $region27: #{tpu_custom_call.1} parent=5 // pred_region
        %s173 = ssub.s32 %s15, 1
        %s174 = sand.u32 %s42, 1
        %s175 = scalar_lea.sflag [#allocation3], %s174
        %s176 = sand.u32 %s42, 1
        %s177 = smul.addr %s176, 16
        %s178 = scalar_lea.vmem [#allocation2], %s177
        // Predicated region
        $region29: #{tpu_custom_call.1} parent=27 // pred_check
          %p179 = pneg %p55
        $region30: #{tpu_custom_call.1} parent=27 // pred_check_branch
          %181 = sbr.rel (%p179) target = $region32
        $region31: #{tpu_custom_call.1} parent=27 // pred_region
          %182 = dma.done %s175, 256
        $region32: #{tpu_custom_call.1} parent=27 // pred_fallthru
          _
        // Predicated region
        $region33: #{tpu_custom_call.1} parent=27 // pred_check
          %p183 = pneg %p81
        $region34: #{tpu_custom_call.1} parent=27 // pred_check_branch
          %185 = sbr.rel (%p183) target = $region36
        $region35: #{tpu_custom_call.1} parent=27 // pred_region
          %186 = dma.done [#allocation6], 1024
        $region36: #{tpu_custom_call.1} parent=27 // pred_fallthru
          _
        %s187 = sand.u32 %s42, 1
        %s188 = scalar_lea.sflag [#allocation3], %s187
        %s189 = sand.u32 %s42, 1
        %s190 = smul.addr %s189, 16
        %s191 = scalar_lea.vmem [#allocation2], %s190
        %p192 = pneg %p55
        %p193 = pneg %p52
        %p194 = pneg %p81
        %p195 = pneg %p78
        %p196 = pneg %p109
        %p197 = pneg %p106
        %s198 = sand.u32 %s96, 1
        %s199 = scalar_lea.sflag [#allocation4], %s198
        %s200 = sand.u32 %s96, 1
        %s201 = smul.addr %s200, 16
        %s202 = scalar_lea.vmem [#allocation7], %s201
        %s203 = smul.u32 2, %s24
        %s204 = smul.u32 2, %s24
        %s205 = smul.u32 2, %s24
        %v206 = vld [vmem:[%s178] ss:$4 sm:$0x3]
        %s207 = scalar_lea.vmem %s178, 8 [#allocation2]
        %v208 = vld [vmem:[%s207] ss:$4 sm:$0x3]
        %v209 = vld [vmem:[#allocation5] sm:$0xff]
        %s210 = scalar_lea.vmem [#allocation5], 32
        %v211 = vld [vmem:[%s210] sm:$0xff]
        %v213 = vlaneseq
        %v214 = vshrl.u32 %v213, 7
        %v215 = vsub.s32 0, %v214
        %v216 = vrot.slane %v206, %v215
        %v217 = vlaneseq
        %v218 = vshrl.u32 %v217, 7
        %v219 = vsub.s32 1, %v218
        %v220 = vrot.slane %v206, %v219
        %v224 = vcombine.high %v209, %v209
        %v226 = vmul.f32 %v216, %v209
        %v227 = vmul.f32 %v220, %v224
        %v229 = vlaneseq
        %v230 = vshrl.u32 %v229, 7
        %v231 = vsub.s32 0, %v230
        %v232 = vrot.slane %v208, %v231
        %v233 = vlaneseq
        %v234 = vshrl.u32 %v233, 7
        %v235 = vsub.s32 1, %v234
        %v236 = vrot.slane %v208, %v235
        %v240 = vcombine.high %v211, %v211
        %v242 = vmul.f32 %v232, %v211
        %v243 = vmul.f32 %v236, %v240
        %v244 = vsub.f32 %v226, %v242
        %v245 = vsub.f32 %v227, %v243
        %v246 = vmul.f32 %v216, %v211
        %v247 = vmul.f32 %v220, %v240
        %v248 = vmul.f32 %v232, %v209
        %v249 = vmul.f32 %v236, %v224
        %v250 = vadd.f32 %v246, %v248
        %v251 = vadd.f32 %v247, %v249
        %s252 = scalar_lea.vmem %s178, 1 [#allocation2]
        %v253 = vld [vmem:[%s252] ss:$4 sm:$0x3]
        %s254 = scalar_lea.vmem %s207, 1 [#allocation2]
        %v255 = vld [vmem:[%s254] ss:$4 sm:$0x3]
        %s256 = scalar_lea.vmem [#allocation5], 8
        %v257 = vld [vmem:[%s256] sm:$0xff]
        %s258 = scalar_lea.vmem [#allocation5], 40
        %v259 = vld [vmem:[%s258] sm:$0xff]
        %v261 = vlaneseq
        %v262 = vshrl.u32 %v261, 7
        %v263 = vsub.s32 0, %v262
        %v264 = vrot.slane %v253, %v263
        %v265 = vlaneseq
        %v266 = vshrl.u32 %v265, 7
        %v267 = vsub.s32 1, %v266
        %v268 = vrot.slane %v253, %v267
        %v272 = vcombine.high %v257, %v257
        %v274 = vmul.f32 %v264, %v257
        %v275 = vmul.f32 %v268, %v272
        %v277 = vlaneseq
        %v278 = vshrl.u32 %v277, 7
        %v279 = vsub.s32 0, %v278
        %v280 = vrot.slane %v255, %v279
        %v281 = vlaneseq
        %v282 = vshrl.u32 %v281, 7
        %v283 = vsub.s32 1, %v282
        %v284 = vrot.slane %v255, %v283
        %v288 = vcombine.high %v259, %v259
        %v290 = vmul.f32 %v280, %v259
        %v291 = vmul.f32 %v284, %v288
        %v292 = vsub.f32 %v274, %v290
        %v293 = vsub.f32 %v275, %v291
        %v294 = vmul.f32 %v264, %v259
        %v295 = vmul.f32 %v268, %v288
        %v296 = vmul.f32 %v280, %v257
        %v297 = vmul.f32 %v284, %v272
        %v298 = vadd.f32 %v294, %v296
        %v299 = vadd.f32 %v295, %v297
        %v300 = vadd.f32 %v244, %v292
        %v301 = vadd.f32 %v245, %v293
        %v302 = vadd.f32 %v250, %v298
        %v303 = vadd.f32 %v251, %v299
        %s304 = scalar_lea.vmem %s178, 2 [#allocation2]
        %v305 = vld [vmem:[%s304] ss:$4 sm:$0x3]
        %s306 = scalar_lea.vmem %s207, 2 [#allocation2]
        %v307 = vld [vmem:[%s306] ss:$4 sm:$0x3]
        %s308 = scalar_lea.vmem [#allocation5], 16
        %v309 = vld [vmem:[%s308] sm:$0xff]
        %s310 = scalar_lea.vmem [#allocation5], 48
        %v311 = vld [vmem:[%s310] sm:$0xff]
        %v313 = vlaneseq
        %v314 = vshrl.u32 %v313, 7
        %v315 = vsub.s32 0, %v314
        %v316 = vrot.slane %v305, %v315
        %v317 = vlaneseq
        %v318 = vshrl.u32 %v317, 7
        %v319 = vsub.s32 1, %v318
        %v320 = vrot.slane %v305, %v319
        %v324 = vcombine.high %v309, %v309
        %v326 = vmul.f32 %v316, %v309
        %v327 = vmul.f32 %v320, %v324
        %v329 = vlaneseq
        %v330 = vshrl.u32 %v329, 7
        %v331 = vsub.s32 0, %v330
        %v332 = vrot.slane %v307, %v331
        %v333 = vlaneseq
        %v334 = vshrl.u32 %v333, 7
        %v335 = vsub.s32 1, %v334
        %v336 = vrot.slane %v307, %v335
        %v340 = vcombine.high %v311, %v311
        %v342 = vmul.f32 %v332, %v311
        %v343 = vmul.f32 %v336, %v340
        %v344 = vsub.f32 %v326, %v342
        %v345 = vsub.f32 %v327, %v343
        %v346 = vmul.f32 %v316, %v311
        %v347 = vmul.f32 %v320, %v340
        %v348 = vmul.f32 %v332, %v309
        %v349 = vmul.f32 %v336, %v324
        %v350 = vadd.f32 %v346, %v348
        %v351 = vadd.f32 %v347, %v349
        %v352 = vadd.f32 %v300, %v344
        %v353 = vadd.f32 %v301, %v345
        %v354 = vadd.f32 %v302, %v350
        %v355 = vadd.f32 %v303, %v351
        %s356 = scalar_lea.vmem %s178, 3 [#allocation2]
        %v357 = vld [vmem:[%s356] ss:$4 sm:$0x3]
        %s358 = scalar_lea.vmem %s207, 3 [#allocation2]
        %v359 = vld [vmem:[%s358] ss:$4 sm:$0x3]
        %s360 = scalar_lea.vmem [#allocation5], 24
        %v361 = vld [vmem:[%s360] sm:$0xff]
        %s362 = scalar_lea.vmem [#allocation5], 56
        %v363 = vld [vmem:[%s362] sm:$0xff]
        %v365 = vlaneseq
        %v366 = vshrl.u32 %v365, 7
        %v367 = vsub.s32 0, %v366
        %v368 = vrot.slane %v357, %v367
        %v369 = vlaneseq
        %v370 = vshrl.u32 %v369, 7
        %v371 = vsub.s32 1, %v370
        %v372 = vrot.slane %v357, %v371
        %v376 = vcombine.high %v361, %v361
        %v378 = vmul.f32 %v368, %v361
        %v379 = vmul.f32 %v372, %v376
        %v381 = vlaneseq
        %v382 = vshrl.u32 %v381, 7
        %v383 = vsub.s32 0, %v382
        %v384 = vrot.slane %v359, %v383
        %v385 = vlaneseq
        %v386 = vshrl.u32 %v385, 7
        %v387 = vsub.s32 1, %v386
        %v388 = vrot.slane %v359, %v387
        %v392 = vcombine.high %v363, %v363
        %v394 = vmul.f32 %v384, %v363
        %v395 = vmul.f32 %v388, %v392
        %v396 = vsub.f32 %v378, %v394
        %v397 = vsub.f32 %v379, %v395
        %v398 = vmul.f32 %v368, %v363
        %v399 = vmul.f32 %v372, %v392
        %v400 = vmul.f32 %v384, %v361
        %v401 = vmul.f32 %v388, %v376
        %v402 = vadd.f32 %v398, %v400
        %v403 = vadd.f32 %v399, %v401
        %v404 = vadd.f32 %v352, %v396
        %v405 = vadd.f32 %v353, %v397
        %v406 = vadd.f32 %v354, %v402
        %v407 = vadd.f32 %v355, %v403
        %v410 = vcombine.low %v404, %v405
        %412 = vst [vmem:[%s202] sm:$0xff] %v410
        %v415 = vcombine.low %v406, %v407
        %s417 = scalar_lea.vmem %s202, 8 [#allocation7]
        %418 = vst [vmem:[%s417] sm:$0xff] %v415
        %s419 = sand.u32 %s96, 1
        %s420 = scalar_lea.sflag [#allocation4], %s419
        %s421 = sand.u32 %s96, 1
        %s422 = smul.addr %s421, 16
        %s423 = scalar_lea.vmem [#allocation7], %s422
        // Predicated region
        $region37: #{tpu_custom_call.1} parent=27 // pred_check
          %p424 = pneg %p106
        $region38: #{tpu_custom_call.1} parent=27 // pred_check_branch
          %426 = sbr.rel (%p424) target = $region40
        $region39: #{tpu_custom_call.1} parent=27 // pred_region
          %s427 = smul.u32 2, %s24
          %s429 = ssub.s32 256, 256
          %430 = vsyncadd %s420, %s429
          %s431 = smul.addr %s25, 2
          %s432 = sadd.s32 %s427, %s431
          %s433 = smul.addr %s432, 64
          %s434 = scalar_lea.hbm %s2, %s433
          %s435 = sshll.u32 %s423, 4
          %s436 = int_to_ptr.vmem [resolvable:$true] %s435
          %441 = dma.vmem_to_hbm [thread:$0]  %s436, 256, %s434, %s420, 128, 256, 8
        $region40: #{tpu_custom_call.1} parent=27 // pred_fallthru
          _
      $region28: #{tpu_custom_call.1} parent=5 // pred_fallthru
        _
      %p442 = scmp.le.s32.totalorder 2, %s15
      // Predicated region
      $region41: #{tpu_custom_call.1} parent=5 // pred_check
        %p443 = pneg %p442
      $region42: #{tpu_custom_call.1} parent=5 // pred_check_branch
        %445 = sbr.rel (%p443) target = $region44
      $region43: #{tpu_custom_call.1} parent=5 // pred_region
        %s446 = ssub.s32 %s15, 2
        // Predicated region
        $region45: #{tpu_custom_call.1} parent=43 // pred_check
          %p447 = pneg %p112
        $region46: #{tpu_custom_call.1} parent=43 // pred_check_branch
          %449 = sbr.rel (%p447) target = $region48
        $region47: #{tpu_custom_call.1} parent=43 // pred_region
          %s450 = sand.u32 %s97, 1
          %s451 = scalar_lea.sflag [#allocation4], %s450
          %s452 = sand.u32 %s97, 1
          %s453 = smul.addr %s452, 16
          %s454 = scalar_lea.vmem [#allocation7], %s453
          %455 = dma.done %s451, 256
        $region48: #{tpu_custom_call.1} parent=43 // pred_fallthru
          _
      $region44: #{tpu_custom_call.1} parent=5 // pred_fallthru
        _
    $region6: #{tpu_custom_call.1} parent=1 // loop_footer
      %s19 = sadd.s32 1, %s15
    $region7: #{tpu_custom_call.1} parent=1 // loop_footer_branch
      %14 = sbr.rel target = $region3
    $region8: #{tpu_custom_call.1} parent=1 // loop_exit
      _
    %456 = vsyncpa [#allocation3], 1
    %s457 = scalar_lea.sflag [#allocation3], 1
    %458 = vsyncpa %s457, 1
    %459 = vsyncpa [#allocation6], 1
    %460 = vsyncpa [#allocation4], 1
    %s461 = scalar_lea.sflag [#allocation4], 1
    %462 = vsyncpa %s461, 1

</llo_original>
